<compile_context>
chip_gen: v5e
topology: v5e:2x2
jax: 0.10.0
libtpu: 0.0.40
codegen_flags: <defaults>
</compile_context>

<pallas_src>
import jax
import jax.numpy as jnp
from jax.experimental import pallas as pl
from jax.experimental.pallas import tpu as pltpu


def _round_up(x, m):
    return ((x + m - 1) // m) * m


def _negative_network_kernel(x_ref, w1_ref, b1_ref, w2_ref, b2_ref, o_ref):
    # core_module: Linear -> ReLU -> Linear.  Matmuls hit the MXU with f32
    # accumulation; bias / ReLU / logsigmoid run in f32 on the VPU/EUP.
    h = jnp.dot(x_ref[...], w1_ref[...], preferred_element_type=jnp.float32)
    h = jnp.maximum(h + b1_ref[...].astype(jnp.float32), 0.0)
    y = jnp.dot(h.astype(w2_ref.dtype), w2_ref[...],
                preferred_element_type=jnp.float32)
    y = y + b2_ref[...].astype(jnp.float32)
    # nn.LogSigmoid, numerically stable:
    #   log(sigmoid(y)) = min(y, 0) - log1p(exp(-|y|))
    # exp / log1p go to the EUP slot and are essentially free under the matmuls.
    o_ref[...] = jnp.minimum(y, 0.0) - jnp.log1p(jnp.exp(-jnp.abs(y)))


def prepare_negative_network_params(w1, b1, w2, b2, *,
                                    compute_dtype=jnp.bfloat16):
    """Cast the core-MLP parameters once (hoisted out of the per-call path).

    Weights are cast to the MXU streaming dtype (bf16 by default, f32 allowed);
    biases are kept in f32 so all elementwise math stays f32 on every chip.
    """
    return (w1.astype(compute_dtype), b1.astype(jnp.float32),
            w2.astype(compute_dtype), b2.astype(jnp.float32))


def negative_network_forward(x, params, *, tile_b=4096):
    """Fused NegativeNetwork forward pass on TPU via Pallas.

    x:      [B, D_in] float array
    params: (w1, b1, w2, b2) from prepare_negative_network_params
            w1: [D_in, H], b1: [1, H] (f32), w2: [H, D_out], b2: [1, D_out] (f32)
    returns: [B, D_out] float32, all entries <= 0 (logsigmoid range).
    """
    w1, b1, w2, b2 = params
    compute_dtype = w1.dtype
    B, D_in = x.shape
    H = w1.shape[1]
    D_out = w2.shape[1]

    # Sublane alignment for the streamed batch tiles: bf16 packs two rows per
    # sublane, so align to 16 rows; f32 aligns to 8.
    align = 16 if jnp.dtype(compute_dtype).itemsize == 2 else 8
    tile_b = _round_up(max(int(tile_b), align), align)

    B_a = _round_up(B, align)
    if B_a <= tile_b:
        if B_a >= 512:
            # A single tile would cover the whole batch; split into >= 2 grid
            # steps so both TensorCores on v7x get work via the "parallel" axis.
            tile_b = _round_up(-(-B_a // 2), 256)
        else:
            tile_b = B_a
    B_p = _round_up(B_a, tile_b)
    if B_p != B:
        x = jnp.pad(x, ((0, B_p - B), (0, 0)))

    # Narrow-format streaming of x (bf16 on all chips is safe: only the MXU
    # inputs are bf16; accumulation and elementwise math are f32).
    x = x.astype(compute_dtype)

    grid = (B_p // tile_b,)

    itemsize = jnp.dtype(compute_dtype).itemsize
    cost = pl.CostEstimate(
        flops=2 * B_p * (D_in * H + H * D_out),
        transcendentals=2 * B_p * D_out,          # exp + log1p per output elem
        bytes_accessed=(B_p * D_in * itemsize         # x stream
                        + (D_in * H + H * D_out) * itemsize  # weights
                        + (H + D_out) * 4                     # biases (f32)
                        + B_p * D_out * 4),                   # output writeback
    )

    out = pl.pallas_call(
        _negative_network_kernel,
        out_shape=jax.ShapeDtypeStruct((B_p, D_out), jnp.float32),
        grid=grid,
        in_specs=[
            pl.BlockSpec((tile_b, D_in), lambda i: (i, 0)),   # x: streamed
            pl.BlockSpec((D_in, H), lambda i: (0, 0)),        # w1: VMEM-resident
            pl.BlockSpec((1, H), lambda i: (0, 0)),           # b1: resident
            pl.BlockSpec((H, D_out), lambda i: (0, 0)),       # w2: resident
            pl.BlockSpec((1, D_out), lambda i: (0, 0)),       # b2: resident
        ],
        # Unpadded output: last block dim == full array dim (D_out), so the
        # (8,128) rule is satisfied; avoids 16x padded writeback traffic.
        out_specs=pl.BlockSpec((tile_b, D_out), lambda i: (i, 0)),
        compiler_params=pltpu.CompilerParams(
            # Batch tiles are independent -> shard across both TCs on v7x.
            dimension_semantics=("parallel",),
        ),
        cost_estimate=cost,
    )(x, w1, b1, w2, b2)

    return out[:B]


if __name__ == "__main__":
    # Small deterministic shapes consistent with the module's forward.
    B, D_IN, HIDDEN, D_OUT = 8, 32, 32, 8

    key = jax.random.PRNGKey(0)
    kx, kw1, kb1, kw2, kb2, kx2 = jax.random.split(key, 6)

    x = jax.random.normal(kx, (B, D_IN), dtype=jnp.float32)
    # Deterministic synthetic core_module parameters (not a checkpoint load).
    w1 = jax.random.normal(kw1, (D_IN, HIDDEN), dtype=jnp.float32) * 0.1
    b1 = jax.random.normal(kb1, (1, HIDDEN), dtype=jnp.float32) * 0.1
    w2 = jax.random.normal(kw2, (HIDDEN, D_OUT), dtype=jnp.float32) * 0.1
    b2 = jax.random.normal(kb2, (1, D_OUT), dtype=jnp.float32) * 0.1

    # Pure-JAX reference of the same semantics.
    def ref_fn(xx):
        h = jnp.maximum(xx @ w1 + b1, 0.0)
        return jax.nn.log_sigmoid(h @ w2 + b2)

    # --- f32 streaming path (tight correctness check) ---
    params_f32 = prepare_negative_network_params(w1, b1, w2, b2,
                                                 compute_dtype=jnp.float32)
    out_f32 = jax.block_until_ready(negative_network_forward(x, params_f32))
    assert out_f32.shape == (B, D_OUT)
    # logsigmoid range is (-inf, 0]; exactly 0.0 is possible for very large
    # pre-activations, so check <= 0 rather than strict negativity.
    assert bool(jnp.all(out_f32 <= 0.0)), "LogSigmoid output must be non-positive"
    assert jnp.allclose(out_f32, ref_fn(x), atol=1e-5, rtol=1e-5), \
        "mismatch vs reference (f32)"

    # --- bf16 streaming path (default; looser tolerance) ---
    params_bf16 = prepare_negative_network_params(w1, b1, w2, b2)
    out_bf16 = jax.block_until_ready(negative_network_forward(x, params_bf16))
    assert out_bf16.shape == (B, D_OUT)
    assert bool(jnp.all(out_bf16 <= 0.0))
    assert jnp.allclose(out_bf16, ref_fn(x), atol=5e-2, rtol=5e-2), \
        "mismatch vs reference (bf16)"

    # --- multi-tile path (exercises grid > 1 / the two-TC split heuristic) ---
    B2 = 640
    x2 = jax.random.normal(kx2, (B2, D_IN), dtype=jnp.float32)
    out2 = jax.block_until_ready(negative_network_forward(x2, params_bf16))
    assert out2.shape == (B2, D_OUT)
    assert bool(jnp.all(out2 <= 0.0))
    assert jnp.allclose(out2, ref_fn(x2), atol=5e-2, rtol=5e-2), \
        "mismatch vs reference (bf16, multi-tile)"

    print("KERNEL_OK")
</pallas_src>

<mosaic_0001>
module attributes {stable_mosaic.version = 11 : i64} {
  func.func @_negative_network_kernel(%arg0: i32, %arg1: memref<8x32xf32, #tpu.memory_space<vmem>>, %arg2: memref<32x32xf32, #tpu.memory_space<vmem>>, %arg3: memref<1x32xf32, #tpu.memory_space<vmem>>, %arg4: memref<32x8xf32, #tpu.memory_space<vmem>>, %arg5: memref<1x8xf32, #tpu.memory_space<vmem>>, %arg6: memref<8x8xf32, #tpu.memory_space<vmem>>) attributes {dimension_semantics = [#tpu.dimension_semantics<parallel>], iteration_bounds = array<i64: 1>, scalar_prefetch = 0 : i64, scratch_operands = 0 : i64, tpu.core_type = #tpu.core_type<tc>, window_params = [{transform_indices = @transform_0, window_bounds = array<i64: 8, 32>}, {pipeline_mode = #tpu.pipeline_mode<synchronous>, transform_indices = @transform_1, window_bounds = array<i64: 32, 32>}, {pipeline_mode = #tpu.pipeline_mode<synchronous>, transform_indices = @transform_2, window_bounds = array<i64: 1, 32>}, {pipeline_mode = #tpu.pipeline_mode<synchronous>, transform_indices = @transform_3, window_bounds = array<i64: 32, 8>}, {pipeline_mode = #tpu.pipeline_mode<synchronous>, transform_indices = @transform_4, window_bounds = array<i64: 1, 8>}, {transform_indices = @transform_5, window_bounds = array<i64: 8, 8>}]} {
    %c0 = arith.constant 0 : index
    %c0_0 = arith.constant 0 : index
    %0 = vector.load %arg1[%c0, %c0_0] : memref<8x32xf32, #tpu.memory_space<vmem>>, vector<8x32xf32>
    %c0_1 = arith.constant 0 : index
    %c0_2 = arith.constant 0 : index
    %1 = vector.load %arg2[%c0_1, %c0_2] : memref<32x32xf32, #tpu.memory_space<vmem>>, vector<32x32xf32>
    %cst = arith.constant dense<0.000000e+00> : vector<8x32xf32>
    %2 = tpu.matmul %0, %1, %cst {dimension_numbers = #tpu.dot_dimension_numbers<[1], [0], [0], [1], [0, 0, 1, 1], [], []>} : vector<8x32xf32>, vector<32x32xf32>, vector<8x32xf32> -> vector<8x32xf32>
    %c0_3 = arith.constant 0 : index
    %c0_4 = arith.constant 0 : index
    %3 = vector.load %arg3[%c0_3, %c0_4] : memref<1x32xf32, #tpu.memory_space<vmem>>, vector<1x32xf32>
    %4 = vector.broadcast %3 : vector<1x32xf32> to vector<8x32xf32>
    %5 = arith.addf %2, %4 : vector<8x32xf32>
    %cst_5 = arith.constant 0.000000e+00 : f32
    %6 = vector.broadcast %cst_5 : f32 to vector<8x32xf32>
    %7 = arith.maximumf %5, %6 : vector<8x32xf32>
    %c0_6 = arith.constant 0 : index
    %c0_7 = arith.constant 0 : index
    %8 = vector.load %arg4[%c0_6, %c0_7] : memref<32x8xf32, #tpu.memory_space<vmem>>, vector<32x8xf32>
    %cst_8 = arith.constant dense<0.000000e+00> : vector<8x8xf32>
    %9 = tpu.matmul %7, %8, %cst_8 {dimension_numbers = #tpu.dot_dimension_numbers<[1], [0], [0], [1], [0, 0, 1, 1], [], []>} : vector<8x32xf32>, vector<32x8xf32>, vector<8x8xf32> -> vector<8x8xf32>
    %c0_9 = arith.constant 0 : index
    %c0_10 = arith.constant 0 : index
    %10 = vector.load %arg5[%c0_9, %c0_10] : memref<1x8xf32, #tpu.memory_space<vmem>>, vector<1x8xf32>
    %11 = vector.broadcast %10 : vector<1x8xf32> to vector<8x8xf32>
    %12 = arith.addf %9, %11 : vector<8x8xf32>
    %cst_11 = arith.constant 0.000000e+00 : f32
    %13 = vector.broadcast %cst_11 : f32 to vector<8x8xf32>
    %14 = arith.minimumf %12, %13 : vector<8x8xf32>
    %15 = math.absf %12 : vector<8x8xf32>
    %cst_12 = arith.constant 0.000000e+00 : f32
    %16 = vector.broadcast %cst_12 : f32 to vector<8x8xf32>
    %17 = arith.subf %16, %15 : vector<8x8xf32>
    %18 = math.exp %17 : vector<8x8xf32>
    %19 = math.log1p %18 : vector<8x8xf32>
    %20 = arith.subf %14, %19 : vector<8x8xf32>
    %c0_13 = arith.constant 0 : index
    %c0_14 = arith.constant 0 : index
    %21 = vector.load %arg6[%c0_13, %c0_14] : memref<8x8xf32, #tpu.memory_space<vmem>>, vector<8x8xf32>
    tpu.vector_store %arg6[%c0_13, %c0_14], %20 {strides = array<i32>} : memref<8x8xf32, #tpu.memory_space<vmem>>, vector<8x8xf32>,
    return
  }
  func.func @transform_0(%arg0: i32) -> (i32, i32) {
    %c0_i32 = arith.constant 0 : i32
    %c0_i32_0 = arith.constant 0 : i32
    return %arg0, %c0_i32 : i32, i32
  }
  func.func @transform_1(%arg0: i32) -> (i32, i32) {
    %c0_i32 = arith.constant 0 : i32
    %c0_i32_0 = arith.constant 0 : i32
    %c0_i32_1 = arith.constant 0 : i32
    return %c0_i32, %c0_i32_0 : i32, i32
  }
  func.func @transform_2(%arg0: i32) -> (i32, i32) {
    %c0_i32 = arith.constant 0 : i32
    %c0_i32_0 = arith.constant 0 : i32
    %c0_i32_1 = arith.constant 0 : i32
    return %c0_i32, %c0_i32_0 : i32, i32
  }
  func.func @transform_3(%arg0: i32) -> (i32, i32) {
    %c0_i32 = arith.constant 0 : i32
    %c0_i32_0 = arith.constant 0 : i32
    %c0_i32_1 = arith.constant 0 : i32
    return %c0_i32, %c0_i32_0 : i32, i32
  }
  func.func @transform_4(%arg0: i32) -> (i32, i32) {
    %c0_i32 = arith.constant 0 : i32
    %c0_i32_0 = arith.constant 0 : i32
    %c0_i32_1 = arith.constant 0 : i32
    return %c0_i32, %c0_i32_0 : i32, i32
  }
  func.func @transform_5(%arg0: i32) -> (i32, i32) {
    %c0_i32 = arith.constant 0 : i32
    %c0_i32_0 = arith.constant 0 : i32
    return %arg0, %c0_i32 : i32, i32
  }
}

</mosaic_0001>

<llo_original>
// kernel: tpu_custom_call.1
$region0: #{tpu_custom_call.1}
  #allocation0 [shape = 'u32[]', space=smem, size = 0x4, offset = 0x4, fixed_abs, tag = 'smem constant byte address 0x4 - core index']
  #allocation1 [shape = 'u32[72,128]{1,0:T(1,128)}', space=vmem, size = 0x9000, scoped, tag = 'internal scratch']
  %s0 = inlined_call_operand.vmem [shape: f32[8,32], index: 0, kind: input, shape index: {}]
  %s1 = inlined_call_operand.vmem [shape: f32[32,32], index: 1, kind: input, shape index: {}]
  %s2 = inlined_call_operand.vmem [shape: f32[1,32], index: 2, kind: input, shape index: {}]
  %s3 = inlined_call_operand.vmem [shape: f32[32,8], index: 3, kind: input, shape index: {}]
  %s4 = inlined_call_operand.vmem [shape: f32[1,8], index: 4, kind: input, shape index: {}]
  %s5 = inlined_call_operand.hbm [shape: f32[8,8], index: 5, kind: output, shape index: {}]
  %s6 = sld [smem:[#allocation0]]
  $region30: #{tpu_custom_call.1} parent=0
    _
  %s8 = ssub.s32 1, %s6
  %s9 = scalar_select 0, %s8, %s6
  $region1: #{tpu_custom_call.1} parent=0
    #allocation2 [shape = 'u8[4096]{0}', space=vmem, size = 0x1000, scoped, tag = 'output window, operand 0, single buffered']
    #allocation3 [shape = 's32[1]{0}', space=sflag, size = 0x4, scoped, tag = 'scoped memory for tpu_custom_call.1']
    %10 = vsyncpa [#allocation3], 0
    // Predicated region
    $region2: #{tpu_custom_call.1} parent=1 // pred_check
      _
    $region3: #{tpu_custom_call.1} parent=1 // pred_check_branch
      %12 = sbr.rel (0) target = $region5
    $region4: #{tpu_custom_call.1} parent=1 // pred_region
      _
    $region5: #{tpu_custom_call.1} parent=1 // pred_fallthru
      _
    // Predicated region
    $region6: #{tpu_custom_call.1} parent=1 // pred_check
      _
    $region7: #{tpu_custom_call.1} parent=1 // pred_check_branch
      %14 = sbr.rel (0) target = $region9
    $region8: #{tpu_custom_call.1} parent=1 // pred_region
      _
    $region9: #{tpu_custom_call.1} parent=1 // pred_fallthru
      _
    // Predicated region
    $region10: #{tpu_custom_call.1} parent=1 // pred_check
      _
    $region11: #{tpu_custom_call.1} parent=1 // pred_check_branch
      %16 = sbr.rel (0) target = $region13
    $region12: #{tpu_custom_call.1} parent=1 // pred_region
      _
    $region13: #{tpu_custom_call.1} parent=1 // pred_fallthru
      _
    // Predicated region
    $region14: #{tpu_custom_call.1} parent=1 // pred_check
      _
    $region15: #{tpu_custom_call.1} parent=1 // pred_check_branch
      %18 = sbr.rel (0) target = $region17
    $region16: #{tpu_custom_call.1} parent=1 // pred_region
      _
    $region17: #{tpu_custom_call.1} parent=1 // pred_fallthru
      _
    // Predicated region
    $region18: #{tpu_custom_call.1} parent=1 // pred_check
      _
    $region19: #{tpu_custom_call.1} parent=1 // pred_check_branch
      %20 = sbr.rel (0) target = $region21
    $region20: #{tpu_custom_call.1} parent=1 // pred_region
      _
    $region21: #{tpu_custom_call.1} parent=1 // pred_fallthru
      _
    %v21 = vld [vmem:[%s0] sm:$0xff]
    %v22 = vld [vmem:[%s1] sm:$0xff]
    %v23 = vld [vmem:[%s1 + $0x8] sm:$0xff]
    %v24 = vld [vmem:[%s1 + $0x10] sm:$0xff]
    %v25 = vld [vmem:[%s1 + $0x18] sm:$0xff]
    %v26 = vld [vmem:[%s2] sm:$0x1]
    %v28 = vperm.slane %v26, 0
    %vm30 = vcmask 261120
    %v32 = vsel %vm30, %v21, 0
    %34 = vmatpush.msra.mxu0 0.0
    %35 = vmatpush.msra.mxu0 0.0
    %36 = vmatpush.msra.mxu0 0.0
    %37 = vmatpush.msra.mxu0 0.0
    %38 = vmatpush.msra.mxu0 0.0
    %39 = vmatpush.msra.mxu0 0.0
    %40 = vmatpush.msra.mxu0 0.0
    %41 = vmatpush.msra.mxu0 0.0
    %42 = vmatpush.msra.mxu0 0.0
    %43 = vmatpush.msra.mxu0 0.0
    %44 = vmatpush.msra.mxu0 0.0
    %45 = vmatpush.msra.mxu0 0.0
    %46 = vmatpush.msra.mxu0 %v25
    %47 = vmatpush.msra.mxu0 %v24
    %48 = vmatpush.msra.mxu0 %v23
    %49 = vmatpush.msra.mxu0 %v22
    %50 = vmatmul.f32.gmra.mxu0 %v32
    %v51 = vpop.f32.mrf.mxu0
    %v52 = vadd.f32 %v28, %v51
    %53 = vdwg.mxu0
    %v54 = vmax.f32 %v52, 0.0
    %v55 = vld [vmem:[%s3] sm:$0xff]
    %v56 = vld [vmem:[%s3 + $0x8] sm:$0xff]
    %v57 = vld [vmem:[%s3 + $0x10] sm:$0xff]
    %v58 = vld [vmem:[%s3 + $0x18] sm:$0xff]
    %v59 = vld [vmem:[%s4] sm:$0x1]
    %v61 = vperm.slane %v59, 0
    %v64 = vsel %vm30, %v54, 0
    %66 = vmatpush.msra.mxu0 0.0
    %67 = vmatpush.msra.mxu0 0.0
    %68 = vmatpush.msra.mxu0 0.0
    %69 = vmatpush.msra.mxu0 0.0
    %70 = vmatpush.msra.mxu0 0.0
    %71 = vmatpush.msra.mxu0 0.0
    %72 = vmatpush.msra.mxu0 0.0
    %73 = vmatpush.msra.mxu0 0.0
    %74 = vmatpush.msra.mxu0 0.0
    %75 = vmatpush.msra.mxu0 0.0
    %76 = vmatpush.msra.mxu0 0.0
    %77 = vmatpush.msra.mxu0 0.0
    %78 = vmatpush.msra.mxu0 %v58
    %79 = vmatpush.msra.mxu0 %v57
    %80 = vmatpush.msra.mxu0 %v56
    %81 = vmatpush.msra.mxu0 %v55
    %82 = vmatmul.f32.gmra.mxu0 %v64
    %v83 = vpop.f32.mrf.mxu0
    %v84 = vadd.f32 %v61, %v83
    %85 = vdwg.mxu0
    %v86 = vmin.f32 %v84, 0.0
    %v87 = vand.u32 2147483647, %v84
    %v88 = vsub.f32 0.0, %v87
    %v89 = vmul.f32 %v88, 1.442695
    %v90 = vpow.pop %v89
    %v91 = vadd.f32 %v90, 1.0
    %v92 = vlog2.pop %v91
    %v93 = vmul.f32 %v92, 0.6931472
    %v94 = vmul.f32 -0.5, %v90
    %v95 = vadd.f32 %v94, 1.0
    %v96 = vmul.f32 %v95, %v90
    %v97 = vand.u32 2147483647, %v90
    %vm98 = vcmp.lt.f32.partialorder %v97, 0.0004427343
    %v99 = vsel %vm98, %v96, %v93
    %v100 = vsub.f32 %v86, %v99
    %vm101 = vcmask 64512
    %102 = vst.msk [vmem:[#allocation2] sm:$0xff] %vm101, %v100
    // Predicated region
    $region22: #{tpu_custom_call.1} parent=1 // pred_check
      _
    $region23: #{tpu_custom_call.1} parent=1 // pred_check_branch
      %104 = sbr.rel (0) target = $region25
    $region24: #{tpu_custom_call.1} parent=1 // pred_region
      %106 = vsyncadd [#allocation3], 0
      %s108 = sshll.u32 [#allocation2], 4
      %s109 = int_to_ptr.vmem [resolvable:$true] %s108
      %s110 = sshll.u32 %s5, 4
      %s111 = int_to_ptr.hbm [resolvable:$true] %s110
      %113 = dma.vmem_to_hbm [thread:$0]  %s109, 128, %s111, [#allocation3]
    $region25: #{tpu_custom_call.1} parent=1 // pred_fallthru
      _
    // Predicated region
    $region26: #{tpu_custom_call.1} parent=1 // pred_check
      _
    $region27: #{tpu_custom_call.1} parent=1 // pred_check_branch
      %115 = sbr.rel (0) target = $region29
    $region28: #{tpu_custom_call.1} parent=1 // pred_region
      %117 = dma.done [#allocation3], 128
    $region29: #{tpu_custom_call.1} parent=1 // pred_fallthru
      _
    %118 = vsyncpa [#allocation3], 1

</llo_original>
